<compile_context>
chip_gen: v7x
topology: tpu7x:2x2x1
jax: 0.10.0
libtpu: 0.0.40
codegen_flags: <defaults>
</compile_context>

<pallas_src>
import functools

import jax
import jax.numpy as jnp
from jax import lax
from jax.experimental import pallas as pl
from jax.experimental.pallas import tpu as pltpu

NEG_SLOPE = 0.01   # nn.LeakyReLU default
BN_EPS = 1e-5      # nn.BatchNorm1d default
_LANE = 128
_VMEM = pltpu.MemorySpace.VMEM


def _round_up(x, m):
    return ((x + m - 1) // m) * m


# ------------------------------ fused kernel --------------------------------

def _fc_fused_kernel(*refs, n_blocks, batch):
    """refs = (x_pad, [wT, b, gamma, beta] * n_blocks, wT_out, b_out, o_pad)."""
    x_ref = refs[0]
    o_ref = refs[-1]

    inv_b = jnp.float32(1.0 / batch)
    # Row of ones: BN batch sums become [1,B] @ [B,N] MXU matmuls (frees the XLU),
    # hoisted once so the constant is built a single time.
    ones_row = jnp.ones((1, batch), jnp.float32)

    h = x_ref[...]                                    # f32 [B, d_pad]
    idx = 1
    for _ in range(n_blocks):
        wT, b, gamma, beta = (refs[idx], refs[idx + 1], refs[idx + 2], refs[idx + 3])
        idx += 4

        # Linear: bf16 operands on the MXU, f32 accumulation, f32 bias add.
        y = jnp.dot(h.astype(jnp.bfloat16), wT[...],
                    preferred_element_type=jnp.float32) + b[...]

        # Dropout(p=0) -> identity ; LeakyReLU (f32 VPU, v5e-safe).
        y = jnp.where(y > 0, y, NEG_SLOPE * y)

        # BatchNorm1d (training mode): single-pass batch stats via MXU row-sums,
        # folded into one scale/shift so the [B,N] tensor sees only y*y and y*scale+shift.
        s1 = jnp.dot(ones_row, y, preferred_element_type=jnp.float32)       # sum(y)
        s2 = jnp.dot(ones_row, y * y, preferred_element_type=jnp.float32)   # sum(y^2)
        mean = s1 * inv_b
        var = jnp.maximum(s2 * inv_b - mean * mean, 0.0)                    # biased variance
        scale = gamma[...] * lax.rsqrt(var + BN_EPS)
        shift = beta[...] - mean * scale
        h = y * scale + shift

    wT_out, b_out = refs[idx], refs[idx + 1]
    # Final Linear; weight/bias columns zero-padded to a multiple of 128 so the single
    # HBM store is lane-dense (no masked vst).
    o_ref[...] = jnp.dot(h.astype(jnp.bfloat16), wT_out[...],
                         preferred_element_type=jnp.float32) + b_out[...]


# ------------------------------ wrapper --------------------------------------

def fc_forward(params, h):
    """h: [B, d_graph_layer] f32 -> [B, n_tasks] f32, one fused pallas_call."""
    batch, d_in = h.shape
    d_in_pad = params["blocks"][0]["wT"].shape[0]
    if d_in != d_in_pad:
        # Zero-pad the feature dim once so every load / MXU contraction is lane-dense.
        h = jnp.pad(h, ((0, 0), (0, d_in_pad - d_in)))

    args = [h]
    for blk in params["blocks"]:
        args += [blk["wT"], blk["b"], blk["gamma"], blk["beta"]]
    args += [params["out"]["wT"], params["out"]["b"]]

    n_blocks = len(params["blocks"])
    n_tasks_pad = params["out"]["wT"].shape[1]

    out_pad = pl.pallas_call(
        functools.partial(_fc_fused_kernel, n_blocks=n_blocks, batch=batch),
        out_shape=jax.ShapeDtypeStruct((batch, n_tasks_pad), jnp.float32),
        in_specs=[pl.BlockSpec(memory_space=_VMEM) for _ in range(len(args))],
        out_specs=pl.BlockSpec(memory_space=_VMEM),
    )(*args)

    # Narrow real result; keep the whole forward under one jit so this slice does not
    # become a separate dispatch.
    return out_pad[:, : params["n_tasks"]]


# --------------------------- parameter construction --------------------------

def init_params(key, d_graph_layer, d_FC_layer, n_FC_layer, n_tasks,
                w_dtype=jnp.bfloat16):
    """FC stack: n_FC_layer hidden blocks (Linear+Dropout+LeakyReLU+BN), then
    Linear(d_FC_layer, n_tasks). Weights stored pre-transposed [in, out] in bf16 and
    zero-padded to lane-aligned dims; biases / BN params stored as (1, out) f32."""
    keys = iter(jax.random.split(key, 2 * (n_FC_layer + 1)))

    d_in_pad = _round_up(d_graph_layer, _LANE)
    d_hid_pad = _round_up(d_FC_layer, _LANE)
    n_tasks_pad = _round_up(n_tasks, _LANE)

    def lin_T(in_f, in_pad, out_f, out_pad):
        w = jax.random.normal(next(keys), (out_f, in_f), jnp.float32) * 0.1
        b = jax.random.normal(next(keys), (out_f,), jnp.float32) * 0.1
        wT = jnp.zeros((in_pad, out_pad), jnp.float32).at[:in_f, :out_f].set(w.T)
        bp = jnp.zeros((1, out_pad), jnp.float32).at[:, :out_f].set(b)
        return wT.astype(w_dtype), bp       # weights bf16, bias stays f32

    blocks = []
    in_f, in_pad = d_graph_layer, d_in_pad
    for _ in range(n_FC_layer):
        wT, b = lin_T(in_f, in_pad, d_FC_layer, d_hid_pad)
        blocks.append({
            "wT": wT,
            "b": b,
            "gamma": jnp.ones((1, d_hid_pad), jnp.float32),   # BatchNorm1d defaults
            "beta": jnp.zeros((1, d_hid_pad), jnp.float32),
        })
        in_f, in_pad = d_FC_layer, d_hid_pad

    wT_out, b_out = lin_T(d_FC_layer, d_hid_pad, n_tasks, n_tasks_pad)

    return {
        "blocks": blocks,
        "out": {"wT": wT_out, "b": b_out},
        "n_tasks": n_tasks,
    }


# ---------------------------------- main -------------------------------------

if __name__ == "__main__":
    # FC(d_graph_layer=64, d_FC_layer=128, n_FC_layer=3, dropout=0.0, n_tasks=2)
    d_graph_layer, d_FC_layer, n_FC_layer, n_tasks = 64, 128, 3, 2
    dropout = 0.0            # identity — matches the kernel's dropout handling
    batch = 16               # for throughput, batch much larger per call (launch-bound here)

    key = jax.random.PRNGKey(0)
    k_x, k_p = jax.random.split(key)

    h = jax.random.normal(k_x, (batch, d_graph_layer), jnp.float32)
    params = init_params(k_p, d_graph_layer, d_FC_layer, n_FC_layer, n_tasks)

    fwd = jax.jit(functools.partial(fc_forward, params))  # pad + kernel + slice: one dispatch
    out = fwd(h)
    jax.block_until_ready(out)
    assert out.shape == (batch, n_tasks)
    print("KERNEL_OK")
</pallas_src>

<mosaic_0001>
module attributes {stable_mosaic.version = 11 : i64} {
  func.func @_fc_fused_kernel(%arg0: memref<16x128xf32, #tpu.memory_space<vmem>>, %arg1: memref<128x128xbf16, #tpu.memory_space<vmem>>, %arg2: memref<1x128xf32, #tpu.memory_space<vmem>>, %arg3: memref<1x128xf32, #tpu.memory_space<vmem>>, %arg4: memref<1x128xf32, #tpu.memory_space<vmem>>, %arg5: memref<128x128xbf16, #tpu.memory_space<vmem>>, %arg6: memref<1x128xf32, #tpu.memory_space<vmem>>, %arg7: memref<1x128xf32, #tpu.memory_space<vmem>>, %arg8: memref<1x128xf32, #tpu.memory_space<vmem>>, %arg9: memref<128x128xbf16, #tpu.memory_space<vmem>>, %arg10: memref<1x128xf32, #tpu.memory_space<vmem>>, %arg11: memref<1x128xf32, #tpu.memory_space<vmem>>, %arg12: memref<1x128xf32, #tpu.memory_space<vmem>>, %arg13: memref<128x128xbf16, #tpu.memory_space<vmem>>, %arg14: memref<1x128xf32, #tpu.memory_space<vmem>>, %arg15: memref<16x128xf32, #tpu.memory_space<vmem>>) attributes {dimension_semantics = [], scalar_prefetch = 0 : i64, scratch_operands = 0 : i64, tpu.core_type = #tpu.core_type<tc>} {
    %cst = arith.constant 1.000000e+00 : f32
    %0 = vector.broadcast %cst : f32 to vector<1x16xf32>
    %c0 = arith.constant 0 : index
    %c0_0 = arith.constant 0 : index
    %1 = vector.load %arg0[%c0, %c0_0] : memref<16x128xf32, #tpu.memory_space<vmem>>, vector<16x128xf32>
    %2 = arith.truncf %1 : vector<16x128xf32> to vector<16x128xbf16>
    %c0_1 = arith.constant 0 : index
    %c0_2 = arith.constant 0 : index
    %3 = vector.load %arg1[%c0_1, %c0_2] : memref<128x128xbf16, #tpu.memory_space<vmem>>, vector<128x128xbf16>
    %cst_3 = arith.constant dense<0.000000e+00> : vector<16x128xf32>
    %4 = tpu.matmul %2, %3, %cst_3 {dimension_numbers = #tpu.dot_dimension_numbers<[1], [0], [0], [1], [0, 0, 1, 1], [], []>} : vector<16x128xbf16>, vector<128x128xbf16>, vector<16x128xf32> -> vector<16x128xf32>
    %c0_4 = arith.constant 0 : index
    %c0_5 = arith.constant 0 : index
    %5 = vector.load %arg2[%c0_4, %c0_5] : memref<1x128xf32, #tpu.memory_space<vmem>>, vector<1x128xf32>
    %6 = vector.broadcast %5 : vector<1x128xf32> to vector<16x128xf32>
    %7 = arith.addf %4, %6 : vector<16x128xf32>
    %cst_6 = arith.constant 0.000000e+00 : f32
    %8 = vector.broadcast %cst_6 : f32 to vector<16x128xf32>
    %9 = arith.cmpf ogt, %7, %8 : vector<16x128xf32>
    %cst_7 = arith.constant 0.00999999977 : f32
    %10 = vector.broadcast %cst_7 : f32 to vector<16x128xf32>
    %11 = arith.mulf %10, %7 : vector<16x128xf32>
    %12 = arith.select %9, %7, %11 : vector<16x128xi1>, vector<16x128xf32>
    %cst_8 = arith.constant dense<0.000000e+00> : vector<1x128xf32>
    %13 = tpu.matmul %0, %12, %cst_8 {dimension_numbers = #tpu.dot_dimension_numbers<[1], [0], [0], [1], [0, 0, 1, 1], [], []>} : vector<1x16xf32>, vector<16x128xf32>, vector<1x128xf32> -> vector<1x128xf32>
    %14 = arith.mulf %12, %12 : vector<16x128xf32>
    %cst_9 = arith.constant dense<0.000000e+00> : vector<1x128xf32>
    %15 = tpu.matmul %0, %14, %cst_9 {dimension_numbers = #tpu.dot_dimension_numbers<[1], [0], [0], [1], [0, 0, 1, 1], [], []>} : vector<1x16xf32>, vector<16x128xf32>, vector<1x128xf32> -> vector<1x128xf32>
    %cst_10 = arith.constant 6.250000e-02 : f32
    %16 = vector.broadcast %cst_10 : f32 to vector<1x128xf32>
    %17 = arith.mulf %13, %16 : vector<1x128xf32>
    %cst_11 = arith.constant 6.250000e-02 : f32
    %18 = vector.broadcast %cst_11 : f32 to vector<1x128xf32>
    %19 = arith.mulf %15, %18 : vector<1x128xf32>
    %20 = arith.mulf %17, %17 : vector<1x128xf32>
    %21 = arith.subf %19, %20 : vector<1x128xf32>
    %cst_12 = arith.constant 0.000000e+00 : f32
    %22 = vector.broadcast %cst_12 : f32 to vector<1x128xf32>
    %23 = arith.maximumf %21, %22 : vector<1x128xf32>
    %c0_13 = arith.constant 0 : index
    %c0_14 = arith.constant 0 : index
    %24 = vector.load %arg3[%c0_13, %c0_14] : memref<1x128xf32, #tpu.memory_space<vmem>>, vector<1x128xf32>
    %cst_15 = arith.constant 9.99999974E-6 : f32
    %25 = vector.broadcast %cst_15 : f32 to vector<1x128xf32>
    %26 = arith.addf %23, %25 : vector<1x128xf32>
    %27 = math.rsqrt %26 : vector<1x128xf32>
    %28 = arith.mulf %24, %27 : vector<1x128xf32>
    %c0_16 = arith.constant 0 : index
    %c0_17 = arith.constant 0 : index
    %29 = vector.load %arg4[%c0_16, %c0_17] : memref<1x128xf32, #tpu.memory_space<vmem>>, vector<1x128xf32>
    %30 = arith.mulf %17, %28 : vector<1x128xf32>
    %31 = arith.subf %29, %30 : vector<1x128xf32>
    %32 = vector.broadcast %28 : vector<1x128xf32> to vector<16x128xf32>
    %33 = arith.mulf %12, %32 : vector<16x128xf32>
    %34 = vector.broadcast %31 : vector<1x128xf32> to vector<16x128xf32>
    %35 = arith.addf %33, %34 : vector<16x128xf32>
    %36 = arith.truncf %35 : vector<16x128xf32> to vector<16x128xbf16>
    %c0_18 = arith.constant 0 : index
    %c0_19 = arith.constant 0 : index
    %37 = vector.load %arg5[%c0_18, %c0_19] : memref<128x128xbf16, #tpu.memory_space<vmem>>, vector<128x128xbf16>
    %cst_20 = arith.constant dense<0.000000e+00> : vector<16x128xf32>
    %38 = tpu.matmul %36, %37, %cst_20 {dimension_numbers = #tpu.dot_dimension_numbers<[1], [0], [0], [1], [0, 0, 1, 1], [], []>} : vector<16x128xbf16>, vector<128x128xbf16>, vector<16x128xf32> -> vector<16x128xf32>
    %c0_21 = arith.constant 0 : index
    %c0_22 = arith.constant 0 : index
    %39 = vector.load %arg6[%c0_21, %c0_22] : memref<1x128xf32, #tpu.memory_space<vmem>>, vector<1x128xf32>
    %40 = vector.broadcast %39 : vector<1x128xf32> to vector<16x128xf32>
    %41 = arith.addf %38, %40 : vector<16x128xf32>
    %cst_23 = arith.constant 0.000000e+00 : f32
    %42 = vector.broadcast %cst_23 : f32 to vector<16x128xf32>
    %43 = arith.cmpf ogt, %41, %42 : vector<16x128xf32>
    %cst_24 = arith.constant 0.00999999977 : f32
    %44 = vector.broadcast %cst_24 : f32 to vector<16x128xf32>
    %45 = arith.mulf %44, %41 : vector<16x128xf32>
    %46 = arith.select %43, %41, %45 : vector<16x128xi1>, vector<16x128xf32>
    %cst_25 = arith.constant dense<0.000000e+00> : vector<1x128xf32>
    %47 = tpu.matmul %0, %46, %cst_25 {dimension_numbers = #tpu.dot_dimension_numbers<[1], [0], [0], [1], [0, 0, 1, 1], [], []>} : vector<1x16xf32>, vector<16x128xf32>, vector<1x128xf32> -> vector<1x128xf32>
    %48 = arith.mulf %46, %46 : vector<16x128xf32>
    %cst_26 = arith.constant dense<0.000000e+00> : vector<1x128xf32>
    %49 = tpu.matmul %0, %48, %cst_26 {dimension_numbers = #tpu.dot_dimension_numbers<[1], [0], [0], [1], [0, 0, 1, 1], [], []>} : vector<1x16xf32>, vector<16x128xf32>, vector<1x128xf32> -> vector<1x128xf32>
    %cst_27 = arith.constant 6.250000e-02 : f32
    %50 = vector.broadcast %cst_27 : f32 to vector<1x128xf32>
    %51 = arith.mulf %47, %50 : vector<1x128xf32>
    %cst_28 = arith.constant 6.250000e-02 : f32
    %52 = vector.broadcast %cst_28 : f32 to vector<1x128xf32>
    %53 = arith.mulf %49, %52 : vector<1x128xf32>
    %54 = arith.mulf %51, %51 : vector<1x128xf32>
    %55 = arith.subf %53, %54 : vector<1x128xf32>
    %cst_29 = arith.constant 0.000000e+00 : f32
    %56 = vector.broadcast %cst_29 : f32 to vector<1x128xf32>
    %57 = arith.maximumf %55, %56 : vector<1x128xf32>
    %c0_30 = arith.constant 0 : index
    %c0_31 = arith.constant 0 : index
    %58 = vector.load %arg7[%c0_30, %c0_31] : memref<1x128xf32, #tpu.memory_space<vmem>>, vector<1x128xf32>
    %cst_32 = arith.constant 9.99999974E-6 : f32
    %59 = vector.broadcast %cst_32 : f32 to vector<1x128xf32>
    %60 = arith.addf %57, %59 : vector<1x128xf32>
    %61 = math.rsqrt %60 : vector<1x128xf32>
    %62 = arith.mulf %58, %61 : vector<1x128xf32>
    %c0_33 = arith.constant 0 : index
    %c0_34 = arith.constant 0 : index
    %63 = vector.load %arg8[%c0_33, %c0_34] : memref<1x128xf32, #tpu.memory_space<vmem>>, vector<1x128xf32>
    %64 = arith.mulf %51, %62 : vector<1x128xf32>
    %65 = arith.subf %63, %64 : vector<1x128xf32>
    %66 = vector.broadcast %62 : vector<1x128xf32> to vector<16x128xf32>
    %67 = arith.mulf %46, %66 : vector<16x128xf32>
    %68 = vector.broadcast %65 : vector<1x128xf32> to vector<16x128xf32>
    %69 = arith.addf %67, %68 : vector<16x128xf32>
    %70 = arith.truncf %69 : vector<16x128xf32> to vector<16x128xbf16>
    %c0_35 = arith.constant 0 : index
    %c0_36 = arith.constant 0 : index
    %71 = vector.load %arg9[%c0_35, %c0_36] : memref<128x128xbf16, #tpu.memory_space<vmem>>, vector<128x128xbf16>
    %cst_37 = arith.constant dense<0.000000e+00> : vector<16x128xf32>
    %72 = tpu.matmul %70, %71, %cst_37 {dimension_numbers = #tpu.dot_dimension_numbers<[1], [0], [0], [1], [0, 0, 1, 1], [], []>} : vector<16x128xbf16>, vector<128x128xbf16>, vector<16x128xf32> -> vector<16x128xf32>
    %c0_38 = arith.constant 0 : index
    %c0_39 = arith.constant 0 : index
    %73 = vector.load %arg10[%c0_38, %c0_39] : memref<1x128xf32, #tpu.memory_space<vmem>>, vector<1x128xf32>
    %74 = vector.broadcast %73 : vector<1x128xf32> to vector<16x128xf32>
    %75 = arith.addf %72, %74 : vector<16x128xf32>
    %cst_40 = arith.constant 0.000000e+00 : f32
    %76 = vector.broadcast %cst_40 : f32 to vector<16x128xf32>
    %77 = arith.cmpf ogt, %75, %76 : vector<16x128xf32>
    %cst_41 = arith.constant 0.00999999977 : f32
    %78 = vector.broadcast %cst_41 : f32 to vector<16x128xf32>
    %79 = arith.mulf %78, %75 : vector<16x128xf32>
    %80 = arith.select %77, %75, %79 : vector<16x128xi1>, vector<16x128xf32>
    %cst_42 = arith.constant dense<0.000000e+00> : vector<1x128xf32>
    %81 = tpu.matmul %0, %80, %cst_42 {dimension_numbers = #tpu.dot_dimension_numbers<[1], [0], [0], [1], [0, 0, 1, 1], [], []>} : vector<1x16xf32>, vector<16x128xf32>, vector<1x128xf32> -> vector<1x128xf32>
    %82 = arith.mulf %80, %80 : vector<16x128xf32>
    %cst_43 = arith.constant dense<0.000000e+00> : vector<1x128xf32>
    %83 = tpu.matmul %0, %82, %cst_43 {dimension_numbers = #tpu.dot_dimension_numbers<[1], [0], [0], [1], [0, 0, 1, 1], [], []>} : vector<1x16xf32>, vector<16x128xf32>, vector<1x128xf32> -> vector<1x128xf32>
    %cst_44 = arith.constant 6.250000e-02 : f32
    %84 = vector.broadcast %cst_44 : f32 to vector<1x128xf32>
    %85 = arith.mulf %81, %84 : vector<1x128xf32>
    %cst_45 = arith.constant 6.250000e-02 : f32
    %86 = vector.broadcast %cst_45 : f32 to vector<1x128xf32>
    %87 = arith.mulf %83, %86 : vector<1x128xf32>
    %88 = arith.mulf %85, %85 : vector<1x128xf32>
    %89 = arith.subf %87, %88 : vector<1x128xf32>
    %cst_46 = arith.constant 0.000000e+00 : f32
    %90 = vector.broadcast %cst_46 : f32 to vector<1x128xf32>
    %91 = arith.maximumf %89, %90 : vector<1x128xf32>
    %c0_47 = arith.constant 0 : index
    %c0_48 = arith.constant 0 : index
    %92 = vector.load %arg11[%c0_47, %c0_48] : memref<1x128xf32, #tpu.memory_space<vmem>>, vector<1x128xf32>
    %cst_49 = arith.constant 9.99999974E-6 : f32
    %93 = vector.broadcast %cst_49 : f32 to vector<1x128xf32>
    %94 = arith.addf %91, %93 : vector<1x128xf32>
    %95 = math.rsqrt %94 : vector<1x128xf32>
    %96 = arith.mulf %92, %95 : vector<1x128xf32>
    %c0_50 = arith.constant 0 : index
    %c0_51 = arith.constant 0 : index
    %97 = vector.load %arg12[%c0_50, %c0_51] : memref<1x128xf32, #tpu.memory_space<vmem>>, vector<1x128xf32>
    %98 = arith.mulf %85, %96 : vector<1x128xf32>
    %99 = arith.subf %97, %98 : vector<1x128xf32>
    %100 = vector.broadcast %96 : vector<1x128xf32> to vector<16x128xf32>
    %101 = arith.mulf %80, %100 : vector<16x128xf32>
    %102 = vector.broadcast %99 : vector<1x128xf32> to vector<16x128xf32>
    %103 = arith.addf %101, %102 : vector<16x128xf32>
    %104 = arith.truncf %103 : vector<16x128xf32> to vector<16x128xbf16>
    %c0_52 = arith.constant 0 : index
    %c0_53 = arith.constant 0 : index
    %105 = vector.load %arg13[%c0_52, %c0_53] : memref<128x128xbf16, #tpu.memory_space<vmem>>, vector<128x128xbf16>
    %cst_54 = arith.constant dense<0.000000e+00> : vector<16x128xf32>
    %106 = tpu.matmul %104, %105, %cst_54 {dimension_numbers = #tpu.dot_dimension_numbers<[1], [0], [0], [1], [0, 0, 1, 1], [], []>} : vector<16x128xbf16>, vector<128x128xbf16>, vector<16x128xf32> -> vector<16x128xf32>
    %c0_55 = arith.constant 0 : index
    %c0_56 = arith.constant 0 : index
    %107 = vector.load %arg14[%c0_55, %c0_56] : memref<1x128xf32, #tpu.memory_space<vmem>>, vector<1x128xf32>
    %108 = vector.broadcast %107 : vector<1x128xf32> to vector<16x128xf32>
    %109 = arith.addf %106, %108 : vector<16x128xf32>
    %c0_57 = arith.constant 0 : index
    %c0_58 = arith.constant 0 : index
    %110 = vector.load %arg15[%c0_57, %c0_58] : memref<16x128xf32, #tpu.memory_space<vmem>>, vector<16x128xf32>
    tpu.vector_store %arg15[%c0_57, %c0_58], %109 {strides = array<i32>} : memref<16x128xf32, #tpu.memory_space<vmem>>, vector<16x128xf32>,
    return
  }
}

</mosaic_0001>

<llo_original>
// kernel: fc_forward.1
$region0: #{fc_forward.1}
  #allocation0 [shape = 'u32[]', space=smem, size = 0x4, offset = 0x4, fixed_abs, tag = 'smem constant byte address 0x4 - core index']
  #allocation1 [shape = 'u32[144,128]{1,0:T(1,128)}', space=vmem, size = 0x12000, scoped, tag = 'internal scratch']
  %s0 = inlined_call_operand.vmem [shape: f32[16,128], index: 0, kind: input, shape index: {}]
  %s1 = inlined_call_operand.hbm [shape: bf16[128,128], index: 1, kind: input, shape index: {}]
  %s2 = inlined_call_operand.vmem [shape: f32[1,128], index: 2, kind: input, shape index: {}]
  %s3 = inlined_call_operand.vmem [shape: f32[1,128], index: 3, kind: input, shape index: {}, may-alias: {3,7,11}]
  %s4 = inlined_call_operand.vmem [shape: f32[1,128], index: 4, kind: input, shape index: {}, may-alias: {4,8,12}]
  %s5 = inlined_call_operand.hbm [shape: bf16[128,128], index: 5, kind: input, shape index: {}]
  %s6 = inlined_call_operand.vmem [shape: f32[1,128], index: 6, kind: input, shape index: {}]
  %s7 = inlined_call_operand.vmem [shape: f32[1,128], index: 7, kind: input, shape index: {}, may-alias: {3,7,11}]
  %s8 = inlined_call_operand.vmem [shape: f32[1,128], index: 8, kind: input, shape index: {}, may-alias: {4,8,12}]
  %s9 = inlined_call_operand.hbm [shape: bf16[128,128], index: 9, kind: input, shape index: {}]
  %s10 = inlined_call_operand.vmem [shape: f32[1,128], index: 10, kind: input, shape index: {}]
  %s11 = inlined_call_operand.vmem [shape: f32[1,128], index: 11, kind: input, shape index: {}, may-alias: {3,7,11}]
  %s12 = inlined_call_operand.vmem [shape: f32[1,128], index: 12, kind: input, shape index: {}, may-alias: {4,8,12}]
  %s13 = inlined_call_operand.vmem [shape: bf16[128,128], index: 13, kind: input, shape index: {}]
  %s14 = inlined_call_operand.vmem [shape: f32[1,128], index: 14, kind: input, shape index: {}]
  %s15 = inlined_call_operand.vmem [shape: f32[16,128], index: 15, kind: output, shape index: {}]
  %s16 = sld [smem:[#allocation0]]
  $region82: #{fc_forward.1} parent=0
    _
  %s18 = ssub.s32 1, %s16
  %s19 = scalar_select 0, %s18, %s16
  $region1: #{fc_forward.1} parent=0
    #allocation2 [shape = 'u8[32768]{0}', space=vmem, size = 0x8000, scoped, tag = 'input window, operand 1, single buffered']
    #allocation3 [shape = 's32[1]{0}', space=sflag, size = 0x4, scoped, tag = 'scoped memory for fc_forward.1']
    #allocation4 [shape = 'u8[32768]{0}', space=vmem, size = 0x8000, scoped, tag = 'input window, operand 5, single buffered']
    #allocation5 [shape = 's32[1]{0}', space=sflag, size = 0x4, scoped, tag = 'scoped memory for fc_forward.1']
    #allocation6 [shape = 'u8[32768]{0}', space=vmem, size = 0x8000, scoped, tag = 'input window, operand 9, single buffered']
    %20 = vsyncpa [#allocation3], 0
    %21 = vsyncpa [#allocation5], 0
    // Predicated region
    $region2: #{fc_forward.1} parent=1 // pred_check
      _
    $region3: #{fc_forward.1} parent=1 // pred_check_branch
      %23 = sbr.rel (0) target = $region5
    $region4: #{fc_forward.1} parent=1 // pred_region
      _
    $region5: #{fc_forward.1} parent=1 // pred_fallthru
      _
    // Predicated region
    $region6: #{fc_forward.1} parent=1 // pred_check
      _
    $region7: #{fc_forward.1} parent=1 // pred_check_branch
      %25 = sbr.rel (0) target = $region9
    $region8: #{fc_forward.1} parent=1 // pred_region
      %s27 = ssub.s32 1024, 1024
      %28 = vsyncadd [#allocation3], %s27
      %s29 = sshll.u32 [#allocation2], 4
      %s30 = int_to_ptr.vmem [resolvable:$true] %s29
      %35 = dma.hbm_to_vmem [thread:$0]  %s1, 1024, %s30, [#allocation3], 64, 64, 4
    $region9: #{fc_forward.1} parent=1 // pred_fallthru
      _
    // Predicated region
    $region10: #{fc_forward.1} parent=1 // pred_check
      _
    $region11: #{fc_forward.1} parent=1 // pred_check_branch
      %37 = sbr.rel (0) target = $region13
    $region12: #{fc_forward.1} parent=1 // pred_region
      _
    $region13: #{fc_forward.1} parent=1 // pred_fallthru
      _
    // Predicated region
    $region14: #{fc_forward.1} parent=1 // pred_check
      _
    $region15: #{fc_forward.1} parent=1 // pred_check_branch
      %39 = sbr.rel (0) target = $region17
    $region16: #{fc_forward.1} parent=1 // pred_region
      _
    $region17: #{fc_forward.1} parent=1 // pred_fallthru
      _
    // Predicated region
    $region18: #{fc_forward.1} parent=1 // pred_check
      _
    $region19: #{fc_forward.1} parent=1 // pred_check_branch
      %41 = sbr.rel (0) target = $region21
    $region20: #{fc_forward.1} parent=1 // pred_region
      _
    $region21: #{fc_forward.1} parent=1 // pred_fallthru
      _
    // Predicated region
    $region22: #{fc_forward.1} parent=1 // pred_check
      _
    $region23: #{fc_forward.1} parent=1 // pred_check_branch
      %43 = sbr.rel (0) target = $region25
    $region24: #{fc_forward.1} parent=1 // pred_region
      %s45 = ssub.s32 1024, 1024
      %46 = vsyncadd [#allocation5], %s45
      %s47 = sshll.u32 [#allocation4], 4
      %s48 = int_to_ptr.vmem [resolvable:$true] %s47
      %53 = dma.hbm_to_vmem [thread:$0]  %s5, 1024, %s48, [#allocation5], 64, 64, 4
    $region25: #{fc_forward.1} parent=1 // pred_fallthru
      _
    // Predicated region
    $region26: #{fc_forward.1} parent=1 // pred_check
      _
    $region27: #{fc_forward.1} parent=1 // pred_check_branch
      %55 = sbr.rel (0) target = $region29
    $region28: #{fc_forward.1} parent=1 // pred_region
      _
    $region29: #{fc_forward.1} parent=1 // pred_fallthru
      _
    // Predicated region
    $region30: #{fc_forward.1} parent=1 // pred_check
      _
    $region31: #{fc_forward.1} parent=1 // pred_check_branch
      %57 = sbr.rel (0) target = $region33
    $region32: #{fc_forward.1} parent=1 // pred_region
      _
    $region33: #{fc_forward.1} parent=1 // pred_fallthru
      _
    // Predicated region
    $region34: #{fc_forward.1} parent=1 // pred_check
      _
    $region35: #{fc_forward.1} parent=1 // pred_check_branch
      %59 = sbr.rel (0) target = $region37
    $region36: #{fc_forward.1} parent=1 // pred_region
      _
    $region37: #{fc_forward.1} parent=1 // pred_fallthru
      _
    // Predicated region
    $region38: #{fc_forward.1} parent=1 // pred_check
      _
    $region39: #{fc_forward.1} parent=1 // pred_check_branch
      %61 = sbr.rel (0) target = $region41
    $region40: #{fc_forward.1} parent=1 // pred_region
      %s63 = ssub.s32 1024, 1024
      %64 = vsyncadd [#allocation5], %s63
      %s65 = sshll.u32 [#allocation6], 4
      %s66 = int_to_ptr.vmem [resolvable:$true] %s65
      %71 = dma.hbm_to_vmem [thread:$0]  %s9, 1024, %s66, [#allocation5], 64, 64, 4
    $region41: #{fc_forward.1} parent=1 // pred_fallthru
      _
    // Predicated region
    $region42: #{fc_forward.1} parent=1 // pred_check
      _
    $region43: #{fc_forward.1} parent=1 // pred_check_branch
      %73 = sbr.rel (0) target = $region45
    $region44: #{fc_forward.1} parent=1 // pred_region
      _
    $region45: #{fc_forward.1} parent=1 // pred_fallthru
      _
    // Predicated region
    $region46: #{fc_forward.1} parent=1 // pred_check
      _
    $region47: #{fc_forward.1} parent=1 // pred_check_branch
      %75 = sbr.rel (0) target = $region49
    $region48: #{fc_forward.1} parent=1 // pred_region
      _
    $region49: #{fc_forward.1} parent=1 // pred_fallthru
      _
    // Predicated region
    $region50: #{fc_forward.1} parent=1 // pred_check
      _
    $region51: #{fc_forward.1} parent=1 // pred_check_branch
      %77 = sbr.rel (0) target = $region53
    $region52: #{fc_forward.1} parent=1 // pred_region
      _
    $region53: #{fc_forward.1} parent=1 // pred_fallthru
      _
    // Predicated region
    $region54: #{fc_forward.1} parent=1 // pred_check
      _
    $region55: #{fc_forward.1} parent=1 // pred_check_branch
      %79 = sbr.rel (0) target = $region57
    $region56: #{fc_forward.1} parent=1 // pred_region
      _
    $region57: #{fc_forward.1} parent=1 // pred_fallthru
      _
    // Predicated region
    $region58: #{fc_forward.1} parent=1 // pred_check
      _
    $region59: #{fc_forward.1} parent=1 // pred_check_branch
      %81 = sbr.rel (0) target = $region61
    $region60: #{fc_forward.1} parent=1 // pred_region
      _
    $region61: #{fc_forward.1} parent=1 // pred_fallthru
      _
    // Predicated region
    $region62: #{fc_forward.1} parent=1 // pred_check
      _
    $region63: #{fc_forward.1} parent=1 // pred_check_branch
      %83 = sbr.rel (0) target = $region65
    $region64: #{fc_forward.1} parent=1 // pred_region
      %84 = dma.done [#allocation3], 1024
    $region65: #{fc_forward.1} parent=1 // pred_fallthru
      _
    // Predicated region
    $region66: #{fc_forward.1} parent=1 // pred_check
      _
    $region67: #{fc_forward.1} parent=1 // pred_check_branch
      %86 = sbr.rel (0) target = $region69
    $region68: #{fc_forward.1} parent=1 // pred_region
      %87 = dma.done [#allocation5], 1024
    $region69: #{fc_forward.1} parent=1 // pred_fallthru
      _
    // Predicated region
    $region70: #{fc_forward.1} parent=1 // pred_check
      _
    $region71: #{fc_forward.1} parent=1 // pred_check_branch
      %89 = sbr.rel (0) target = $region73
    $region72: #{fc_forward.1} parent=1 // pred_region
      %90 = dma.done [#allocation5], 1024
    $region73: #{fc_forward.1} parent=1 // pred_fallthru
      _
    %v92 = vld [vmem:[%s0] sm:$0xff]
    %v93 = vld [vmem:[%s0 + $0x8] sm:$0xff]
    %v94 = vpack.c.bf16 %v93, %v92
    %v95 = vld [vmem:[#allocation2] sm:$0xf]
    %v96 = vld [vmem:[#allocation2 + $0x4] sm:$0xf]
    %v97 = vld [vmem:[#allocation2 + $0x8] sm:$0xf]
    %v98 = vld [vmem:[#allocation2 + $0xc] sm:$0xf]
    %v99 = vld [vmem:[#allocation2 + $0x10] sm:$0xf]
    %v100 = vld [vmem:[#allocation2 + $0x14] sm:$0xf]
    %v101 = vld [vmem:[#allocation2 + $0x18] sm:$0xf]
    %v102 = vld [vmem:[#allocation2 + $0x1c] sm:$0xf]
    %v103 = vld [vmem:[#allocation2 + $0x20] sm:$0xf]
    %v104 = vld [vmem:[#allocation2 + $0x24] sm:$0xf]
    %v105 = vld [vmem:[#allocation2 + $0x28] sm:$0xf]
    %v106 = vld [vmem:[#allocation2 + $0x2c] sm:$0xf]
    %v107 = vld [vmem:[#allocation2 + $0x30] sm:$0xf]
    %v108 = vld [vmem:[#allocation2 + $0x34] sm:$0xf]
    %v109 = vld [vmem:[#allocation2 + $0x38] sm:$0xf]
    %v110 = vld [vmem:[#allocation2 + $0x3c] sm:$0xf]
    %v111 = vld [vmem:[%s2] sm:$0x1]
    %v113 = vlaneseq
    %v114 = vshrl.u32 %v113, 7
    %v115 = vsub.s32 0, %v114
    %v116 = vrot.slane %v111, %v115
    %v134 = vunpack.c.l.b16 %v95
    %v135 = vunpack.c.l.b16 %v96
    %v136 = vunpack.c.l.b16 %v97
    %v137 = vunpack.c.l.b16 %v98
    %v138 = vunpack.c.l.b16 %v99
    %v139 = vunpack.c.l.b16 %v100
    %v140 = vunpack.c.l.b16 %v101
    %v141 = vunpack.c.l.b16 %v102
    %v142 = vunpack.c.l.b16 %v103
    %v143 = vunpack.c.l.b16 %v104
    %v144 = vunpack.c.l.b16 %v105
    %v145 = vunpack.c.l.b16 %v106
    %v146 = vunpack.c.l.b16 %v107
    %v147 = vunpack.c.l.b16 %v108
    %v148 = vunpack.c.l.b16 %v109
    %v149 = vunpack.c.l.b16 %v110
    %v150 = vpack.c.b16 %v135, %v134
    %v151 = vpack.c.b16 %v137, %v136
    %v152 = vpack.c.b16 %v139, %v138
    %v153 = vpack.c.b16 %v141, %v140
    %v154 = vpack.c.b16 %v143, %v142
    %v155 = vpack.c.b16 %v145, %v144
    %v156 = vpack.c.b16 %v147, %v146
    %v157 = vpack.c.b16 %v149, %v148
    %166 = vmatprep.subr.bf16.mxu0 0
    %167 = vmatpush1.bf16.msra.mxu0 %v150
    %168 = vmatprep.subr.bf16.mxu0 0
    %169 = vmatpush1.bf16.msra.mxu0 %v151
    %170 = vmatprep.subr.bf16.mxu0 0
    %171 = vmatpush1.bf16.msra.mxu0 %v152
    %172 = vmatprep.subr.bf16.mxu0 0
    %173 = vmatpush1.bf16.msra.mxu0 %v153
    %174 = vmatprep.subr.bf16.mxu0 0
    %175 = vmatpush1.bf16.msra.mxu0 %v154
    %176 = vmatprep.subr.bf16.mxu0 0
    %177 = vmatpush1.bf16.msra.mxu0 %v155
    %178 = vmatprep.subr.bf16.mxu0 0
    %179 = vmatpush1.bf16.msra.mxu0 %v156
    %180 = vmatprep.subr.bf16.mxu0 0
    %181 = vmatpush1.bf16.msra.mxu0 %v157
    %182 = vmatprep.subr.bf16.mxu0 0
    %183 = vmatpush1.bf16.msra.mxu0 0
    %184 = vmatprep.subr.bf16.mxu0 0
    %185 = vmatpush1.bf16.msra.mxu0 0
    %186 = vmatprep.subr.bf16.mxu0 0
    %187 = vmatpush1.bf16.msra.mxu0 0
    %188 = vmatprep.subr.bf16.mxu0 0
    %189 = vmatpush1.bf16.msra.mxu0 0
    %190 = vmatprep.subr.bf16.mxu0 0
    %191 = vmatpush1.bf16.msra.mxu0 0
    %192 = vmatprep.subr.bf16.mxu0 0
    %193 = vmatpush1.bf16.msra.mxu0 0
    %194 = vmatprep.subr.bf16.mxu0 0
    %195 = vmatpush1.bf16.msra.mxu0 0
    %196 = vmatprep.subr.bf16.mxu0 0
    %197 = vmatpush1.bf16.msra.mxu0 0
    %198 = vmatprep.mubr.bf16.mxu0 0
    %199 = vmatmul.mubr.bf16.gmra.mrb[0].mxu0 %v94
    %v200 = vpop.f32.mrb[0].mxu0
    %v201 = vadd.f32 %v116, %v200
    %v202 = vpop.f32.mrb[0].mxu0
    %v203 = vpop.f32.mrb[0].mxu0
    %v204 = vadd.f32 %v116, %v203
    %v205 = vpop.f32.mrb[0].mxu0
    %206 = vdwg.mxu0
    %vm207 = vcmp.gt.f32.partialorder %v201, 0.0
    %vm208 = vcmp.gt.f32.partialorder %v204, 0.0
    %v209 = vmul.f32 %v201, 0.01
    %v210 = vmul.f32 %v204, 0.01
    %v211 = vsel %vm207, %v201, %v209
    %v212 = vsel %vm208, %v204, %v210
    %vm213 = vcmask 130048
    %v215 = vsel %vm213, 1.0, 0
    %217 = vmatprep.subr.mxu0 0.0
    %218 = vmatpush1.msra.mxu0 %v211
    %219 = vmatprep.subr.mxu0 0.0
    %220 = vmatpush1.msra.mxu0 %v212
    %221 = vmatprep.subr.mxu0 0.0
    %222 = vmatpush1.msra.mxu0 0.0
    %223 = vmatprep.subr.mxu0 0.0
    %224 = vmatpush1.msra.mxu0 0.0
    %225 = vmatprep.subr.mxu0 0.0
    %226 = vmatpush1.msra.mxu0 0.0
    %227 = vmatprep.subr.mxu0 0.0
    %228 = vmatpush1.msra.mxu0 0.0
    %229 = vmatprep.subr.mxu0 0.0
    %230 = vmatpush1.msra.mxu0 0.0
    %231 = vmatprep.subr.mxu0 0.0
    %232 = vmatpush1.msra.mxu0 0.0
    %233 = vmatprep.subr.mxu0 0.0
    %234 = vmatpush1.msra.mxu0 0.0
    %235 = vmatprep.subr.mxu0 0.0
    %236 = vmatpush1.msra.mxu0 0.0
    %237 = vmatprep.subr.mxu0 0.0
    %238 = vmatpush1.msra.mxu0 0.0
    %239 = vmatprep.subr.mxu0 0.0
    %240 = vmatpush1.msra.mxu0 0.0
    %241 = vmatprep.subr.mxu0 0.0
    %242 = vmatpush1.msra.mxu0 0.0
    %243 = vmatprep.subr.mxu0 0.0
    %244 = vmatpush1.msra.mxu0 0.0
    %245 = vmatprep.subr.mxu0 0.0
    %246 = vmatpush1.msra.mxu0 0.0
    %247 = vmatprep.subr.mxu0 0.0
    %248 = vmatpush1.msra.mxu0 0.0
    %249 = vmatprep.subr.mxu0 0.0
    %250 = vmatpush1.msra.mxu0 0.0
    %251 = vmatprep.subr.mxu0 0.0
    %252 = vmatpush1.msra.mxu0 0.0
    %253 = vmatprep.subr.mxu0 0.0
    %254 = vmatpush1.msra.mxu0 0.0
    %255 = vmatprep.subr.mxu0 0.0
    %256 = vmatpush1.msra.mxu0 0.0
    %257 = vmatprep.subr.mxu0 0.0
    %258 = vmatpush1.msra.mxu0 0.0
    %259 = vmatprep.subr.mxu0 0.0
    %260 = vmatpush1.msra.mxu0 0.0
    %261 = vmatprep.subr.mxu0 0.0
    %262 = vmatpush1.msra.mxu0 0.0
    %263 = vmatprep.subr.mxu0 0.0
    %264 = vmatpush1.msra.mxu0 0.0
    %265 = vmatprep.subr.mxu0 0.0
    %266 = vmatpush1.msra.mxu0 0.0
    %267 = vmatprep.subr.mxu0 0.0
    %268 = vmatpush1.msra.mxu0 0.0
    %269 = vmatprep.subr.mxu0 0.0
    %270 = vmatpush1.msra.mxu0 0.0
    %271 = vmatprep.subr.mxu0 0.0
    %272 = vmatpush1.msra.mxu0 0.0
    %273 = vmatprep.subr.mxu0 0.0
    %274 = vmatpush1.msra.mxu0 0.0
    %275 = vmatprep.subr.mxu0 0.0
    %276 = vmatpush1.msra.mxu0 0.0
    %277 = vmatprep.subr.mxu0 0.0
    %278 = vmatpush1.msra.mxu0 0.0
    %279 = vmatprep.subr.mxu0 0.0
    %280 = vmatpush1.msra.mxu0 0.0
    %281 = vmatprep.mubr.f32.mxu0 0.0
    %282 = vmatmul.mubr.f32.gmra.mrb[0].mxu0 %v215
    %v283 = vpop.f32.mrb[0].mxu0
    %v284 = vadd.f32 0.0, %v283
    %v285 = vpop.f32.mrb[0].mxu0
    %286 = vdwg.mxu0
    %v287 = vmul.f32 %v211, %v211
    %v288 = vmul.f32 %v212, %v212
    %289 = vmatprep.subr.mxu0 0.0
    %290 = vmatpush1.msra.mxu0 %v287
    %291 = vmatprep.subr.mxu0 0.0
    %292 = vmatpush1.msra.mxu0 %v288
    %293 = vmatprep.subr.mxu0 0.0
    %294 = vmatpush1.msra.mxu0 0.0
    %295 = vmatprep.subr.mxu0 0.0
    %296 = vmatpush1.msra.mxu0 0.0
    %297 = vmatprep.subr.mxu0 0.0
    %298 = vmatpush1.msra.mxu0 0.0
    %299 = vmatprep.subr.mxu0 0.0
    %300 = vmatpush1.msra.mxu0 0.0
    %301 = vmatprep.subr.mxu0 0.0
    %302 = vmatpush1.msra.mxu0 0.0
    %303 = vmatprep.subr.mxu0 0.0
    %304 = vmatpush1.msra.mxu0 0.0
    %305 = vmatprep.subr.mxu0 0.0
    %306 = vmatpush1.msra.mxu0 0.0
    %307 = vmatprep.subr.mxu0 0.0
    %308 = vmatpush1.msra.mxu0 0.0
    %309 = vmatprep.subr.mxu0 0.0
    %310 = vmatpush1.msra.mxu0 0.0
    %311 = vmatprep.subr.mxu0 0.0
    %312 = vmatpush1.msra.mxu0 0.0
    %313 = vmatprep.subr.mxu0 0.0
    %314 = vmatpush1.msra.mxu0 0.0
    %315 = vmatprep.subr.mxu0 0.0
    %316 = vmatpush1.msra.mxu0 0.0
    %317 = vmatprep.subr.mxu0 0.0
    %318 = vmatpush1.msra.mxu0 0.0
    %319 = vmatprep.subr.mxu0 0.0
    %320 = vmatpush1.msra.mxu0 0.0
    %321 = vmatprep.subr.mxu0 0.0
    %322 = vmatpush1.msra.mxu0 0.0
    %323 = vmatprep.subr.mxu0 0.0
    %324 = vmatpush1.msra.mxu0 0.0
    %325 = vmatprep.subr.mxu0 0.0
    %326 = vmatpush1.msra.mxu0 0.0
    %327 = vmatprep.subr.mxu0 0.0
    %328 = vmatpush1.msra.mxu0 0.0
    %329 = vmatprep.subr.mxu0 0.0
    %330 = vmatpush1.msra.mxu0 0.0
    %331 = vmatprep.subr.mxu0 0.0
    %332 = vmatpush1.msra.mxu0 0.0
    %333 = vmatprep.subr.mxu0 0.0
    %334 = vmatpush1.msra.mxu0 0.0
    %335 = vmatprep.subr.mxu0 0.0
    %336 = vmatpush1.msra.mxu0 0.0
    %337 = vmatprep.subr.mxu0 0.0
    %338 = vmatpush1.msra.mxu0 0.0
    %339 = vmatprep.subr.mxu0 0.0
    %340 = vmatpush1.msra.mxu0 0.0
    %341 = vmatprep.subr.mxu0 0.0
    %342 = vmatpush1.msra.mxu0 0.0
    %343 = vmatprep.subr.mxu0 0.0
    %344 = vmatpush1.msra.mxu0 0.0
    %345 = vmatprep.subr.mxu0 0.0
    %346 = vmatpush1.msra.mxu0 0.0
    %347 = vmatprep.subr.mxu0 0.0
    %348 = vmatpush1.msra.mxu0 0.0
    %349 = vmatprep.subr.mxu0 0.0
    %350 = vmatpush1.msra.mxu0 0.0
    %351 = vmatprep.subr.mxu0 0.0
    %352 = vmatpush1.msra.mxu0 0.0
    %353 = vmatprep.mubr.f32.mxu0 0.0
    %354 = vmatmul.mubr.f32.gmra.mrb[0].mxu0 %v215
    %v355 = vpop.f32.mrb[0].mxu0
    %v356 = vadd.f32 0.0, %v355
    %v357 = vpop.f32.mrb[0].mxu0
    %358 = vdwg.mxu0
    %v359 = vmul.f32 %v284, 0.0625
    %v360 = vmul.f32 %v356, 0.0625
    %v361 = vmul.f32 %v359, %v359
    %v362 = vsub.f32 %v360, %v361
    %v363 = vmax.f32 %v362, 0.0
    %v364 = vld [vmem:[%s3] sm:$0x1]
    %v365 = vadd.f32 %v363, 1e-05
    %v366 = vrsqrt.pop %v365
    %v367 = vmul.f32 %v364, %v366
    %v368 = vld [vmem:[%s4] sm:$0x1]
    %v369 = vmul.f32 %v359, %v367
    %v370 = vsub.f32 %v368, %v369
    %v372 = vlaneseq
    %v373 = vshrl.u32 %v372, 7
    %v374 = vsub.s32 0, %v373
    %v375 = vrot.slane %v367, %v374
    %v377 = vmul.f32 %v211, %v375
    %v378 = vmul.f32 %v212, %v375
    %v380 = vlaneseq
    %v381 = vshrl.u32 %v380, 7
    %v382 = vsub.s32 0, %v381
    %v383 = vrot.slane %v370, %v382
    %v385 = vadd.f32 %v377, %v383
    %v386 = vadd.f32 %v378, %v383
    %v387 = vpack.c.bf16 %v386, %v385
    %v388 = vld [vmem:[#allocation4] sm:$0xf]
    %v389 = vld [vmem:[#allocation4 + $0x4] sm:$0xf]
    %v390 = vld [vmem:[#allocation4 + $0x8] sm:$0xf]
    %v391 = vld [vmem:[#allocation4 + $0xc] sm:$0xf]
    %v392 = vld [vmem:[#allocation4 + $0x10] sm:$0xf]
    %v393 = vld [vmem:[#allocation4 + $0x14] sm:$0xf]
    %v394 = vld [vmem:[#allocation4 + $0x18] sm:$0xf]
    %v395 = vld [vmem:[#allocation4 + $0x1c] sm:$0xf]
    %v396 = vld [vmem:[#allocation4 + $0x20] sm:$0xf]
    %v397 = vld [vmem:[#allocation4 + $0x24] sm:$0xf]
    %v398 = vld [vmem:[#allocation4 + $0x28] sm:$0xf]
    %v399 = vld [vmem:[#allocation4 + $0x2c] sm:$0xf]
    %v400 = vld [vmem:[#allocation4 + $0x30] sm:$0xf]
    %v401 = vld [vmem:[#allocation4 + $0x34] sm:$0xf]
    %v402 = vld [vmem:[#allocation4 + $0x38] sm:$0xf]
    %v403 = vld [vmem:[#allocation4 + $0x3c] sm:$0xf]
    %v404 = vld [vmem:[%s6] sm:$0x1]
    %v406 = vlaneseq
    %v407 = vshrl.u32 %v406, 7
    %v408 = vsub.s32 0, %v407
    %v409 = vrot.slane %v404, %v408
    %v427 = vunpack.c.l.b16 %v388
    %v428 = vunpack.c.l.b16 %v389
    %v429 = vunpack.c.l.b16 %v390
    %v430 = vunpack.c.l.b16 %v391
    %v431 = vunpack.c.l.b16 %v392
    %v432 = vunpack.c.l.b16 %v393
    %v433 = vunpack.c.l.b16 %v394
    %v434 = vunpack.c.l.b16 %v395
    %v435 = vunpack.c.l.b16 %v396
    %v436 = vunpack.c.l.b16 %v397
    %v437 = vunpack.c.l.b16 %v398
    %v438 = vunpack.c.l.b16 %v399
    %v439 = vunpack.c.l.b16 %v400
    %v440 = vunpack.c.l.b16 %v401
    %v441 = vunpack.c.l.b16 %v402
    %v442 = vunpack.c.l.b16 %v403
    %v443 = vpack.c.b16 %v428, %v427
    %v444 = vpack.c.b16 %v430, %v429
    %v445 = vpack.c.b16 %v432, %v431
    %v446 = vpack.c.b16 %v434, %v433
    %v447 = vpack.c.b16 %v436, %v435
    %v448 = vpack.c.b16 %v438, %v437
    %v449 = vpack.c.b16 %v440, %v439
    %v450 = vpack.c.b16 %v442, %v441
    %459 = vmatprep.subr.bf16.mxu0 0
    %460 = vmatpush1.bf16.msra.mxu0 %v443
    %461 = vmatprep.subr.bf16.mxu0 0
    %462 = vmatpush1.bf16.msra.mxu0 %v444
    %463 = vmatprep.subr.bf16.mxu0 0
    %464 = vmatpush1.bf16.msra.mxu0 %v445
    %465 = vmatprep.subr.bf16.mxu0 0
    %466 = vmatpush1.bf16.msra.mxu0 %v446
    %467 = vmatprep.subr.bf16.mxu0 0
    %468 = vmatpush1.bf16.msra.mxu0 %v447
    %469 = vmatprep.subr.bf16.mxu0 0
    %470 = vmatpush1.bf16.msra.mxu0 %v448
    %471 = vmatprep.subr.bf16.mxu0 0
    %472 = vmatpush1.bf16.msra.mxu0 %v449
    %473 = vmatprep.subr.bf16.mxu0 0
    %474 = vmatpush1.bf16.msra.mxu0 %v450
    %475 = vmatprep.subr.bf16.mxu0 0
    %476 = vmatpush1.bf16.msra.mxu0 0
    %477 = vmatprep.subr.bf16.mxu0 0
    %478 = vmatpush1.bf16.msra.mxu0 0
    %479 = vmatprep.subr.bf16.mxu0 0
    %480 = vmatpush1.bf16.msra.mxu0 0
    %481 = vmatprep.subr.bf16.mxu0 0
    %482 = vmatpush1.bf16.msra.mxu0 0
    %483 = vmatprep.subr.bf16.mxu0 0
    %484 = vmatpush1.bf16.msra.mxu0 0
    %485 = vmatprep.subr.bf16.mxu0 0
    %486 = vmatpush1.bf16.msra.mxu0 0
    %487 = vmatprep.subr.bf16.mxu0 0
    %488 = vmatpush1.bf16.msra.mxu0 0
    %489 = vmatprep.subr.bf16.mxu0 0
    %490 = vmatpush1.bf16.msra.mxu0 0
    %491 = vmatprep.mubr.bf16.mxu0 0
    %492 = vmatmul.mubr.bf16.gmra.mrb[0].mxu0 %v387
    %v493 = vpop.f32.mrb[0].mxu0
    %v494 = vadd.f32 %v409, %v493
    %v495 = vpop.f32.mrb[0].mxu0
    %v496 = vpop.f32.mrb[0].mxu0
    %v497 = vadd.f32 %v409, %v496
    %v498 = vpop.f32.mrb[0].mxu0
    %499 = vdwg.mxu0
    %vm500 = vcmp.gt.f32.partialorder %v494, 0.0
    %vm501 = vcmp.gt.f32.partialorder %v497, 0.0
    %v502 = vmul.f32 %v494, 0.01
    %v503 = vmul.f32 %v497, 0.01
    %v504 = vsel %vm500, %v494, %v502
    %v505 = vsel %vm501, %v497, %v503
    %506 = vmatprep.subr.mxu0 0.0
    %507 = vmatpush1.msra.mxu0 %v504
    %508 = vmatprep.subr.mxu0 0.0
    %509 = vmatpush1.msra.mxu0 %v505
    %510 = vmatprep.subr.mxu0 0.0
    %511 = vmatpush1.msra.mxu0 0.0
    %512 = vmatprep.subr.mxu0 0.0
    %513 = vmatpush1.msra.mxu0 0.0
    %514 = vmatprep.subr.mxu0 0.0
    %515 = vmatpush1.msra.mxu0 0.0
    %516 = vmatprep.subr.mxu0 0.0
    %517 = vmatpush1.msra.mxu0 0.0
    %518 = vmatprep.subr.mxu0 0.0
    %519 = vmatpush1.msra.mxu0 0.0
    %520 = vmatprep.subr.mxu0 0.0
    %521 = vmatpush1.msra.mxu0 0.0
    %522 = vmatprep.subr.mxu0 0.0
    %523 = vmatpush1.msra.mxu0 0.0
    %524 = vmatprep.subr.mxu0 0.0
    %525 = vmatpush1.msra.mxu0 0.0
    %526 = vmatprep.subr.mxu0 0.0
    %527 = vmatpush1.msra.mxu0 0.0
    %528 = vmatprep.subr.mxu0 0.0
    %529 = vmatpush1.msra.mxu0 0.0
    %530 = vmatprep.subr.mxu0 0.0
    %531 = vmatpush1.msra.mxu0 0.0
    %532 = vmatprep.subr.mxu0 0.0
    %533 = vmatpush1.msra.mxu0 0.0
    %534 = vmatprep.subr.mxu0 0.0
    %535 = vmatpush1.msra.mxu0 0.0
    %536 = vmatprep.subr.mxu0 0.0
    %537 = vmatpush1.msra.mxu0 0.0
    %538 = vmatprep.subr.mxu0 0.0
    %539 = vmatpush1.msra.mxu0 0.0
    %540 = vmatprep.subr.mxu0 0.0
    %541 = vmatpush1.msra.mxu0 0.0
    %542 = vmatprep.subr.mxu0 0.0
    %543 = vmatpush1.msra.mxu0 0.0
    %544 = vmatprep.subr.mxu0 0.0
    %545 = vmatpush1.msra.mxu0 0.0
    %546 = vmatprep.subr.mxu0 0.0
    %547 = vmatpush1.msra.mxu0 0.0
    %548 = vmatprep.subr.mxu0 0.0
    %549 = vmatpush1.msra.mxu0 0.0
    %550 = vmatprep.subr.mxu0 0.0
    %551 = vmatpush1.msra.mxu0 0.0
    %552 = vmatprep.subr.mxu0 0.0
    %553 = vmatpush1.msra.mxu0 0.0
    %554 = vmatprep.subr.mxu0 0.0
    %555 = vmatpush1.msra.mxu0 0.0
    %556 = vmatprep.subr.mxu0 0.0
    %557 = vmatpush1.msra.mxu0 0.0
    %558 = vmatprep.subr.mxu0 0.0
    %559 = vmatpush1.msra.mxu0 0.0
    %560 = vmatprep.subr.mxu0 0.0
    %561 = vmatpush1.msra.mxu0 0.0
    %562 = vmatprep.subr.mxu0 0.0
    %563 = vmatpush1.msra.mxu0 0.0
    %564 = vmatprep.subr.mxu0 0.0
    %565 = vmatpush1.msra.mxu0 0.0
    %566 = vmatprep.subr.mxu0 0.0
    %567 = vmatpush1.msra.mxu0 0.0
    %568 = vmatprep.subr.mxu0 0.0
    %569 = vmatpush1.msra.mxu0 0.0
    %570 = vmatprep.mubr.f32.mxu0 0.0
    %571 = vmatmul.mubr.f32.gmra.mrb[0].mxu0 %v215
    %v572 = vpop.f32.mrb[0].mxu0
    %v573 = vadd.f32 0.0, %v572
    %v574 = vpop.f32.mrb[0].mxu0
    %575 = vdwg.mxu0
    %v576 = vmul.f32 %v504, %v504
    %v577 = vmul.f32 %v505, %v505
    %578 = vmatprep.subr.mxu0 0.0
    %579 = vmatpush1.msra.mxu0 %v576
    %580 = vmatprep.subr.mxu0 0.0
    %581 = vmatpush1.msra.mxu0 %v577
    %582 = vmatprep.subr.mxu0 0.0
    %583 = vmatpush1.msra.mxu0 0.0
    %584 = vmatprep.subr.mxu0 0.0
    %585 = vmatpush1.msra.mxu0 0.0
    %586 = vmatprep.subr.mxu0 0.0
    %587 = vmatpush1.msra.mxu0 0.0
    %588 = vmatprep.subr.mxu0 0.0
    %589 = vmatpush1.msra.mxu0 0.0
    %590 = vmatprep.subr.mxu0 0.0
    %591 = vmatpush1.msra.mxu0 0.0
    %592 = vmatprep.subr.mxu0 0.0
    %593 = vmatpush1.msra.mxu0 0.0
    %594 = vmatprep.subr.mxu0 0.0
    %595 = vmatpush1.msra.mxu0 0.0
    %596 = vmatprep.subr.mxu0 0.0
    %597 = vmatpush1.msra.mxu0 0.0
    %598 = vmatprep.subr.mxu0 0.0
    %599 = vmatpush1.msra.mxu0 0.0
    %600 = vmatprep.subr.mxu0 0.0
    %601 = vmatpush1.msra.mxu0 0.0
    %602 = vmatprep.subr.mxu0 0.0
    %603 = vmatpush1.msra.mxu0 0.0
    %604 = vmatprep.subr.mxu0 0.0
    %605 = vmatpush1.msra.mxu0 0.0
    %606 = vmatprep.subr.mxu0 0.0
    %607 = vmatpush1.msra.mxu0 0.0
    %608 = vmatprep.subr.mxu0 0.0
    %609 = vmatpush1.msra.mxu0 0.0
    %610 = vmatprep.subr.mxu0 0.0
    %611 = vmatpush1.msra.mxu0 0.0
    %612 = vmatprep.subr.mxu0 0.0
    %613 = vmatpush1.msra.mxu0 0.0
    %614 = vmatprep.subr.mxu0 0.0
    %615 = vmatpush1.msra.mxu0 0.0
    %616 = vmatprep.subr.mxu0 0.0
    %617 = vmatpush1.msra.mxu0 0.0
    %618 = vmatprep.subr.mxu0 0.0
    %619 = vmatpush1.msra.mxu0 0.0
    %620 = vmatprep.subr.mxu0 0.0
    %621 = vmatpush1.msra.mxu0 0.0
    %622 = vmatprep.subr.mxu0 0.0
    %623 = vmatpush1.msra.mxu0 0.0
    %624 = vmatprep.subr.mxu0 0.0
    %625 = vmatpush1.msra.mxu0 0.0
    %626 = vmatprep.subr.mxu0 0.0
    %627 = vmatpush1.msra.mxu0 0.0
    %628 = vmatprep.subr.mxu0 0.0
    %629 = vmatpush1.msra.mxu0 0.0
    %630 = vmatprep.subr.mxu0 0.0
    %631 = vmatpush1.msra.mxu0 0.0
    %632 = vmatprep.subr.mxu0 0.0
    %633 = vmatpush1.msra.mxu0 0.0
    %634 = vmatprep.subr.mxu0 0.0
    %635 = vmatpush1.msra.mxu0 0.0
    %636 = vmatprep.subr.mxu0 0.0
    %637 = vmatpush1.msra.mxu0 0.0
    %638 = vmatprep.subr.mxu0 0.0
    %639 = vmatpush1.msra.mxu0 0.0
    %640 = vmatprep.subr.mxu0 0.0
    %641 = vmatpush1.msra.mxu0 0.0
    %642 = vmatprep.mubr.f32.mxu0 0.0
    %643 = vmatmul.mubr.f32.gmra.mrb[0].mxu0 %v215
    %v644 = vpop.f32.mrb[0].mxu0
    %v645 = vadd.f32 0.0, %v644
    %v646 = vpop.f32.mrb[0].mxu0
    %647 = vdwg.mxu0
    %v648 = vmul.f32 %v573, 0.0625
    %v649 = vmul.f32 %v645, 0.0625
    %v650 = vmul.f32 %v648, %v648
    %v651 = vsub.f32 %v649, %v650
    %v652 = vmax.f32 %v651, 0.0
    %v653 = vld [vmem:[%s7] sm:$0x1]
    %v654 = vadd.f32 %v652, 1e-05
    %v655 = vrsqrt.pop %v654
    %v656 = vmul.f32 %v653, %v655
    %v657 = vld [vmem:[%s8] sm:$0x1]
    %v658 = vmul.f32 %v648, %v656
    %v659 = vsub.f32 %v657, %v658
    %v661 = vlaneseq
    %v662 = vshrl.u32 %v661, 7
    %v663 = vsub.s32 0, %v662
    %v664 = vrot.slane %v656, %v663
    %v666 = vmul.f32 %v504, %v664
    %v667 = vmul.f32 %v505, %v664
    %v669 = vlaneseq
    %v670 = vshrl.u32 %v669, 7
    %v671 = vsub.s32 0, %v670
    %v672 = vrot.slane %v659, %v671
    %v674 = vadd.f32 %v666, %v672
    %v675 = vadd.f32 %v667, %v672
    %v676 = vpack.c.bf16 %v675, %v674
    %v677 = vld [vmem:[#allocation6] sm:$0xf]
    %v678 = vld [vmem:[#allocation6 + $0x4] sm:$0xf]
    %v679 = vld [vmem:[#allocation6 + $0x8] sm:$0xf]
    %v680 = vld [vmem:[#allocation6 + $0xc] sm:$0xf]
    %v681 = vld [vmem:[#allocation6 + $0x10] sm:$0xf]
    %v682 = vld [vmem:[#allocation6 + $0x14] sm:$0xf]
    %v683 = vld [vmem:[#allocation6 + $0x18] sm:$0xf]
    %v684 = vld [vmem:[#allocation6 + $0x1c] sm:$0xf]
    %v685 = vld [vmem:[#allocation6 + $0x20] sm:$0xf]
    %v686 = vld [vmem:[#allocation6 + $0x24] sm:$0xf]
    %v687 = vld [vmem:[#allocation6 + $0x28] sm:$0xf]
    %v688 = vld [vmem:[#allocation6 + $0x2c] sm:$0xf]
    %v689 = vld [vmem:[#allocation6 + $0x30] sm:$0xf]
    %v690 = vld [vmem:[#allocation6 + $0x34] sm:$0xf]
    %v691 = vld [vmem:[#allocation6 + $0x38] sm:$0xf]
    %v692 = vld [vmem:[#allocation6 + $0x3c] sm:$0xf]
    %v693 = vld [vmem:[%s10] sm:$0x1]
    %v695 = vlaneseq
    %v696 = vshrl.u32 %v695, 7
    %v697 = vsub.s32 0, %v696
    %v698 = vrot.slane %v693, %v697
    %v716 = vunpack.c.l.b16 %v677
    %v717 = vunpack.c.l.b16 %v678
    %v718 = vunpack.c.l.b16 %v679
    %v719 = vunpack.c.l.b16 %v680
    %v720 = vunpack.c.l.b16 %v681
    %v721 = vunpack.c.l.b16 %v682
    %v722 = vunpack.c.l.b16 %v683
    %v723 = vunpack.c.l.b16 %v684
    %v724 = vunpack.c.l.b16 %v685
    %v725 = vunpack.c.l.b16 %v686
    %v726 = vunpack.c.l.b16 %v687
    %v727 = vunpack.c.l.b16 %v688
    %v728 = vunpack.c.l.b16 %v689
    %v729 = vunpack.c.l.b16 %v690
    %v730 = vunpack.c.l.b16 %v691
    %v731 = vunpack.c.l.b16 %v692
    %v732 = vpack.c.b16 %v717, %v716
    %v733 = vpack.c.b16 %v719, %v718
    %v734 = vpack.c.b16 %v721, %v720
    %v735 = vpack.c.b16 %v723, %v722
    %v736 = vpack.c.b16 %v725, %v724
    %v737 = vpack.c.b16 %v727, %v726
    %v738 = vpack.c.b16 %v729, %v728
    %v739 = vpack.c.b16 %v731, %v730
    %748 = vmatprep.subr.bf16.mxu0 0
    %749 = vmatpush1.bf16.msra.mxu0 %v732
    %750 = vmatprep.subr.bf16.mxu0 0
    %751 = vmatpush1.bf16.msra.mxu0 %v733
    %752 = vmatprep.subr.bf16.mxu0 0
    %753 = vmatpush1.bf16.msra.mxu0 %v734
    %754 = vmatprep.subr.bf16.mxu0 0
    %755 = vmatpush1.bf16.msra.mxu0 %v735
    %756 = vmatprep.subr.bf16.mxu0 0
    %757 = vmatpush1.bf16.msra.mxu0 %v736
    %758 = vmatprep.subr.bf16.mxu0 0
    %759 = vmatpush1.bf16.msra.mxu0 %v737
    %760 = vmatprep.subr.bf16.mxu0 0
    %761 = vmatpush1.bf16.msra.mxu0 %v738
    %762 = vmatprep.subr.bf16.mxu0 0
    %763 = vmatpush1.bf16.msra.mxu0 %v739
    %764 = vmatprep.subr.bf16.mxu0 0
    %765 = vmatpush1.bf16.msra.mxu0 0
    %766 = vmatprep.subr.bf16.mxu0 0
    %767 = vmatpush1.bf16.msra.mxu0 0
    %768 = vmatprep.subr.bf16.mxu0 0
    %769 = vmatpush1.bf16.msra.mxu0 0
    %770 = vmatprep.subr.bf16.mxu0 0
    %771 = vmatpush1.bf16.msra.mxu0 0
    %772 = vmatprep.subr.bf16.mxu0 0
    %773 = vmatpush1.bf16.msra.mxu0 0
    %774 = vmatprep.subr.bf16.mxu0 0
    %775 = vmatpush1.bf16.msra.mxu0 0
    %776 = vmatprep.subr.bf16.mxu0 0
    %777 = vmatpush1.bf16.msra.mxu0 0
    %778 = vmatprep.subr.bf16.mxu0 0
    %779 = vmatpush1.bf16.msra.mxu0 0
    %780 = vmatprep.mubr.bf16.mxu0 0
    %781 = vmatmul.mubr.bf16.gmra.mrb[0].mxu0 %v676
    %v782 = vpop.f32.mrb[0].mxu0
    %v783 = vadd.f32 %v698, %v782
    %v784 = vpop.f32.mrb[0].mxu0
    %v785 = vpop.f32.mrb[0].mxu0
    %v786 = vadd.f32 %v698, %v785
    %v787 = vpop.f32.mrb[0].mxu0
    %788 = vdwg.mxu0
    %vm789 = vcmp.gt.f32.partialorder %v783, 0.0
    %vm790 = vcmp.gt.f32.partialorder %v786, 0.0
    %v791 = vmul.f32 %v783, 0.01
    %v792 = vmul.f32 %v786, 0.01
    %v793 = vsel %vm789, %v783, %v791
    %v794 = vsel %vm790, %v786, %v792
    %795 = vmatprep.subr.mxu0 0.0
    %796 = vmatpush1.msra.mxu0 %v793
    %797 = vmatprep.subr.mxu0 0.0
    %798 = vmatpush1.msra.mxu0 %v794
    %799 = vmatprep.subr.mxu0 0.0
    %800 = vmatpush1.msra.mxu0 0.0
    %801 = vmatprep.subr.mxu0 0.0
    %802 = vmatpush1.msra.mxu0 0.0
    %803 = vmatprep.subr.mxu0 0.0
    %804 = vmatpush1.msra.mxu0 0.0
    %805 = vmatprep.subr.mxu0 0.0
    %806 = vmatpush1.msra.mxu0 0.0
    %807 = vmatprep.subr.mxu0 0.0
    %808 = vmatpush1.msra.mxu0 0.0
    %809 = vmatprep.subr.mxu0 0.0
    %810 = vmatpush1.msra.mxu0 0.0
    %811 = vmatprep.subr.mxu0 0.0
    %812 = vmatpush1.msra.mxu0 0.0
    %813 = vmatprep.subr.mxu0 0.0
    %814 = vmatpush1.msra.mxu0 0.0
    %815 = vmatprep.subr.mxu0 0.0
    %816 = vmatpush1.msra.mxu0 0.0
    %817 = vmatprep.subr.mxu0 0.0
    %818 = vmatpush1.msra.mxu0 0.0
    %819 = vmatprep.subr.mxu0 0.0
    %820 = vmatpush1.msra.mxu0 0.0
    %821 = vmatprep.subr.mxu0 0.0
    %822 = vmatpush1.msra.mxu0 0.0
    %823 = vmatprep.subr.mxu0 0.0
    %824 = vmatpush1.msra.mxu0 0.0
    %825 = vmatprep.subr.mxu0 0.0
    %826 = vmatpush1.msra.mxu0 0.0
    %827 = vmatprep.subr.mxu0 0.0
    %828 = vmatpush1.msra.mxu0 0.0
    %829 = vmatprep.subr.mxu0 0.0
    %830 = vmatpush1.msra.mxu0 0.0
    %831 = vmatprep.subr.mxu0 0.0
    %832 = vmatpush1.msra.mxu0 0.0
    %833 = vmatprep.subr.mxu0 0.0
    %834 = vmatpush1.msra.mxu0 0.0
    %835 = vmatprep.subr.mxu0 0.0
    %836 = vmatpush1.msra.mxu0 0.0
    %837 = vmatprep.subr.mxu0 0.0
    %838 = vmatpush1.msra.mxu0 0.0
    %839 = vmatprep.subr.mxu0 0.0
    %840 = vmatpush1.msra.mxu0 0.0
    %841 = vmatprep.subr.mxu0 0.0
    %842 = vmatpush1.msra.mxu0 0.0
    %843 = vmatprep.subr.mxu0 0.0
    %844 = vmatpush1.msra.mxu0 0.0
    %845 = vmatprep.subr.mxu0 0.0
    %846 = vmatpush1.msra.mxu0 0.0
    %847 = vmatprep.subr.mxu0 0.0
    %848 = vmatpush1.msra.mxu0 0.0
    %849 = vmatprep.subr.mxu0 0.0
    %850 = vmatpush1.msra.mxu0 0.0
    %851 = vmatprep.subr.mxu0 0.0
    %852 = vmatpush1.msra.mxu0 0.0
    %853 = vmatprep.subr.mxu0 0.0
    %854 = vmatpush1.msra.mxu0 0.0
    %855 = vmatprep.subr.mxu0 0.0
    %856 = vmatpush1.msra.mxu0 0.0
    %857 = vmatprep.subr.mxu0 0.0
    %858 = vmatpush1.msra.mxu0 0.0
    %859 = vmatprep.mubr.f32.mxu0 0.0
    %860 = vmatmul.mubr.f32.gmra.mrb[0].mxu0 %v215
    %v861 = vpop.f32.mrb[0].mxu0
    %v862 = vadd.f32 0.0, %v861
    %v863 = vpop.f32.mrb[0].mxu0
    %864 = vdwg.mxu0
    %v865 = vmul.f32 %v793, %v793
    %v866 = vmul.f32 %v794, %v794
    %867 = vmatprep.subr.mxu0 0.0
    %868 = vmatpush1.msra.mxu0 %v865
    %869 = vmatprep.subr.mxu0 0.0
    %870 = vmatpush1.msra.mxu0 %v866
    %871 = vmatprep.subr.mxu0 0.0
    %872 = vmatpush1.msra.mxu0 0.0
    %873 = vmatprep.subr.mxu0 0.0
    %874 = vmatpush1.msra.mxu0 0.0
    %875 = vmatprep.subr.mxu0 0.0
    %876 = vmatpush1.msra.mxu0 0.0
    %877 = vmatprep.subr.mxu0 0.0
    %878 = vmatpush1.msra.mxu0 0.0
    %879 = vmatprep.subr.mxu0 0.0
    %880 = vmatpush1.msra.mxu0 0.0
    %881 = vmatprep.subr.mxu0 0.0
    %882 = vmatpush1.msra.mxu0 0.0
    %883 = vmatprep.subr.mxu0 0.0
    %884 = vmatpush1.msra.mxu0 0.0
    %885 = vmatprep.subr.mxu0 0.0
    %886 = vmatpush1.msra.mxu0 0.0
    %887 = vmatprep.subr.mxu0 0.0
    %888 = vmatpush1.msra.mxu0 0.0
    %889 = vmatprep.subr.mxu0 0.0
    %890 = vmatpush1.msra.mxu0 0.0
    %891 = vmatprep.subr.mxu0 0.0
    %892 = vmatpush1.msra.mxu0 0.0
    %893 = vmatprep.subr.mxu0 0.0
    %894 = vmatpush1.msra.mxu0 0.0
    %895 = vmatprep.subr.mxu0 0.0
    %896 = vmatpush1.msra.mxu0 0.0
    %897 = vmatprep.subr.mxu0 0.0
    %898 = vmatpush1.msra.mxu0 0.0
    %899 = vmatprep.subr.mxu0 0.0
    %900 = vmatpush1.msra.mxu0 0.0
    %901 = vmatprep.subr.mxu0 0.0
    %902 = vmatpush1.msra.mxu0 0.0
    %903 = vmatprep.subr.mxu0 0.0
    %904 = vmatpush1.msra.mxu0 0.0
    %905 = vmatprep.subr.mxu0 0.0
    %906 = vmatpush1.msra.mxu0 0.0
    %907 = vmatprep.subr.mxu0 0.0
    %908 = vmatpush1.msra.mxu0 0.0
    %909 = vmatprep.subr.mxu0 0.0
    %910 = vmatpush1.msra.mxu0 0.0
    %911 = vmatprep.subr.mxu0 0.0
    %912 = vmatpush1.msra.mxu0 0.0
    %913 = vmatprep.subr.mxu0 0.0
    %914 = vmatpush1.msra.mxu0 0.0
    %915 = vmatprep.subr.mxu0 0.0
    %916 = vmatpush1.msra.mxu0 0.0
    %917 = vmatprep.subr.mxu0 0.0
    %918 = vmatpush1.msra.mxu0 0.0
    %919 = vmatprep.subr.mxu0 0.0
    %920 = vmatpush1.msra.mxu0 0.0
    %921 = vmatprep.subr.mxu0 0.0
    %922 = vmatpush1.msra.mxu0 0.0
    %923 = vmatprep.subr.mxu0 0.0
    %924 = vmatpush1.msra.mxu0 0.0
    %925 = vmatprep.subr.mxu0 0.0
    %926 = vmatpush1.msra.mxu0 0.0
    %927 = vmatprep.subr.mxu0 0.0
    %928 = vmatpush1.msra.mxu0 0.0
    %929 = vmatprep.subr.mxu0 0.0
    %930 = vmatpush1.msra.mxu0 0.0
    %931 = vmatprep.mubr.f32.mxu0 0.0
    %932 = vmatmul.mubr.f32.gmra.mrb[0].mxu0 %v215
    %v933 = vpop.f32.mrb[0].mxu0
    %v934 = vadd.f32 0.0, %v933
    %v935 = vpop.f32.mrb[0].mxu0
    %936 = vdwg.mxu0
    %v937 = vmul.f32 %v862, 0.0625
    %v938 = vmul.f32 %v934, 0.0625
    %v939 = vmul.f32 %v937, %v937
    %v940 = vsub.f32 %v938, %v939
    %v941 = vmax.f32 %v940, 0.0
    %v942 = vld [vmem:[%s11] sm:$0x1]
    %v943 = vadd.f32 %v941, 1e-05
    %v944 = vrsqrt.pop %v943
    %v945 = vmul.f32 %v942, %v944
    %v946 = vld [vmem:[%s12] sm:$0x1]
    %v947 = vmul.f32 %v937, %v945
    %v948 = vsub.f32 %v946, %v947
    %v950 = vlaneseq
    %v951 = vshrl.u32 %v950, 7
    %v952 = vsub.s32 0, %v951
    %v953 = vrot.slane %v945, %v952
    %v955 = vmul.f32 %v793, %v953
    %v956 = vmul.f32 %v794, %v953
    %v958 = vlaneseq
    %v959 = vshrl.u32 %v958, 7
    %v960 = vsub.s32 0, %v959
    %v961 = vrot.slane %v948, %v960
    %v963 = vadd.f32 %v955, %v961
    %v964 = vadd.f32 %v956, %v961
    %v965 = vpack.c.bf16 %v964, %v963
    %v966 = vld [vmem:[%s13] sm:$0xf]
    %v967 = vld [vmem:[%s13 + $0x4] sm:$0xf]
    %v968 = vld [vmem:[%s13 + $0x8] sm:$0xf]
    %v969 = vld [vmem:[%s13 + $0xc] sm:$0xf]
    %v970 = vld [vmem:[%s13 + $0x10] sm:$0xf]
    %v971 = vld [vmem:[%s13 + $0x14] sm:$0xf]
    %v972 = vld [vmem:[%s13 + $0x18] sm:$0xf]
    %v973 = vld [vmem:[%s13 + $0x1c] sm:$0xf]
    %v974 = vld [vmem:[%s13 + $0x20] sm:$0xf]
    %v975 = vld [vmem:[%s13 + $0x24] sm:$0xf]
    %v976 = vld [vmem:[%s13 + $0x28] sm:$0xf]
    %v977 = vld [vmem:[%s13 + $0x2c] sm:$0xf]
    %v978 = vld [vmem:[%s13 + $0x30] sm:$0xf]
    %v979 = vld [vmem:[%s13 + $0x34] sm:$0xf]
    %v980 = vld [vmem:[%s13 + $0x38] sm:$0xf]
    %v981 = vld [vmem:[%s13 + $0x3c] sm:$0xf]
    %v982 = vld [vmem:[%s14] sm:$0x1]
    %v984 = vlaneseq
    %v985 = vshrl.u32 %v984, 7
    %v986 = vsub.s32 0, %v985
    %v987 = vrot.slane %v982, %v986
    %v1005 = vunpack.c.l.b16 %v966
    %v1006 = vunpack.c.l.b16 %v967
    %v1007 = vunpack.c.l.b16 %v968
    %v1008 = vunpack.c.l.b16 %v969
    %v1009 = vunpack.c.l.b16 %v970
    %v1010 = vunpack.c.l.b16 %v971
    %v1011 = vunpack.c.l.b16 %v972
    %v1012 = vunpack.c.l.b16 %v973
    %v1013 = vunpack.c.l.b16 %v974
    %v1014 = vunpack.c.l.b16 %v975
    %v1015 = vunpack.c.l.b16 %v976
    %v1016 = vunpack.c.l.b16 %v977
    %v1017 = vunpack.c.l.b16 %v978
    %v1018 = vunpack.c.l.b16 %v979
    %v1019 = vunpack.c.l.b16 %v980
    %v1020 = vunpack.c.l.b16 %v981
    %v1021 = vpack.c.b16 %v1006, %v1005
    %v1022 = vpack.c.b16 %v1008, %v1007
    %v1023 = vpack.c.b16 %v1010, %v1009
    %v1024 = vpack.c.b16 %v1012, %v1011
    %v1025 = vpack.c.b16 %v1014, %v1013
    %v1026 = vpack.c.b16 %v1016, %v1015
    %v1027 = vpack.c.b16 %v1018, %v1017
    %v1028 = vpack.c.b16 %v1020, %v1019
    %1037 = vmatprep.subr.bf16.mxu0 0
    %1038 = vmatpush1.bf16.msra.mxu0 %v1021
    %1039 = vmatprep.subr.bf16.mxu0 0
    %1040 = vmatpush1.bf16.msra.mxu0 %v1022
    %1041 = vmatprep.subr.bf16.mxu0 0
    %1042 = vmatpush1.bf16.msra.mxu0 %v1023
    %1043 = vmatprep.subr.bf16.mxu0 0
    %1044 = vmatpush1.bf16.msra.mxu0 %v1024
    %1045 = vmatprep.subr.bf16.mxu0 0
    %1046 = vmatpush1.bf16.msra.mxu0 %v1025
    %1047 = vmatprep.subr.bf16.mxu0 0
    %1048 = vmatpush1.bf16.msra.mxu0 %v1026
    %1049 = vmatprep.subr.bf16.mxu0 0
    %1050 = vmatpush1.bf16.msra.mxu0 %v1027
    %1051 = vmatprep.subr.bf16.mxu0 0
    %1052 = vmatpush1.bf16.msra.mxu0 %v1028
    %1053 = vmatprep.subr.bf16.mxu0 0
    %1054 = vmatpush1.bf16.msra.mxu0 0
    %1055 = vmatprep.subr.bf16.mxu0 0
    %1056 = vmatpush1.bf16.msra.mxu0 0
    %1057 = vmatprep.subr.bf16.mxu0 0
    %1058 = vmatpush1.bf16.msra.mxu0 0
    %1059 = vmatprep.subr.bf16.mxu0 0
    %1060 = vmatpush1.bf16.msra.mxu0 0
    %1061 = vmatprep.subr.bf16.mxu0 0
    %1062 = vmatpush1.bf16.msra.mxu0 0
    %1063 = vmatprep.subr.bf16.mxu0 0
    %1064 = vmatpush1.bf16.msra.mxu0 0
    %1065 = vmatprep.subr.bf16.mxu0 0
    %1066 = vmatpush1.bf16.msra.mxu0 0
    %1067 = vmatprep.subr.bf16.mxu0 0
    %1068 = vmatpush1.bf16.msra.mxu0 0
    %1069 = vmatprep.mubr.bf16.mxu0 0
    %1070 = vmatmul.mubr.bf16.gmra.mrb[0].mxu0 %v965
    %v1071 = vpop.f32.mrb[0].mxu0
    %v1072 = vadd.f32 %v987, %v1071
    %v1073 = vpop.f32.mrb[0].mxu0
    %v1074 = vpop.f32.mrb[0].mxu0
    %v1075 = vadd.f32 %v987, %v1074
    %v1076 = vpop.f32.mrb[0].mxu0
    %1077 = vdwg.mxu0
    %1078 = vst [vmem:[%s15] sm:$0xff] %v1072
    %1079 = vst [vmem:[%s15 + $0x8] sm:$0xff] %v1075
    // Predicated region
    $region74: #{fc_forward.1} parent=1 // pred_check
      _
    $region75: #{fc_forward.1} parent=1 // pred_check_branch
      %1081 = sbr.rel (0) target = $region77
    $region76: #{fc_forward.1} parent=1 // pred_region
      _
    $region77: #{fc_forward.1} parent=1 // pred_fallthru
      _
    // Predicated region
    $region78: #{fc_forward.1} parent=1 // pred_check
      _
    $region79: #{fc_forward.1} parent=1 // pred_check_branch
      %1083 = sbr.rel (0) target = $region81
    $region80: #{fc_forward.1} parent=1 // pred_region
      _
    $region81: #{fc_forward.1} parent=1 // pred_fallthru
      _
    %1084 = vsyncpa [#allocation3], 1
    %1085 = vsyncpa [#allocation5], 1

</llo_original>
